<compile_context>
chip_gen: v5e
topology: v5e:2x2
jax: 0.10.0
libtpu: 0.0.40
codegen_flags: <defaults>
</compile_context>

<pallas_src>
import functools

import jax
import jax.numpy as jnp
from jax.experimental import pallas as pl
from jax.experimental.pallas import tpu as pltpu

EPS = 1e-5


# ---------------------------- Pallas kernel ----------------------------

def glore_stream_kernel(x_ref, wsp_ref, bsp_ref, w1ti_ref, b1_ref, wfw2_ref,
                        gamma_ref, beta_ref, o_ref, *, n_batch, num_s, seq_len):
    """Full GloRe unit for one stream (rgb or ir), batch folded into lanes.

    x_ref:      (C, N*L)          activations, channels-first, batch*spatial on lanes
    wsp/bsp:    (S+Nn, C)/(S+Nn,1) conv_state & conv_proj stacked (1x1 convs + bias)
    w1ti:       (Nn, Nn)          GCN conv1 weight^T + I (residual folded in)
    b1:         (1, Nn)           GCN conv1 bias
    wfw2:       (C, S)            fc_2 weight @ gcn.conv2 weight (pre-folded)
    gamma/beta: (C, 1)            BatchNorm2d affine
    o_ref:      (C, N*L)          out = x + BN(fc_2(GloRe(x)))
    """
    L = seq_len
    nl = n_batch * L
    inv_l = 1.0 / L
    inv_nl = 1.0 / nl

    x = x_ref[...]                                                      # (C, NL) f32

    # conv_state + conv_proj for every batch element in ONE MXU push (+ one bias add).
    sp = jnp.dot(wsp_ref[...], x, preferred_element_type=jnp.float32) + bsp_ref[...]

    w1ti = w1ti_ref[...]
    b1 = b1_ref[...]
    wfw2 = wfw2_ref[...]

    zs = []
    for b in range(n_batch):                  # static unroll; bilinear/GCN is per-batch
        lo = b * L                            # static, lane-tile aligned (L = 256)
        state_b = sp[:num_s, lo:lo + L]       # (S, L)
        proj_b = sp[num_s:, lo:lo + L]        # (Nn, L)

        # n_state = state @ proj^T * (1/L)  -> (S, Nn)
        n_state = jax.lax.dot_general(
            state_b, proj_b, (((1,), (1,)), ((), ())),
            preferred_element_type=jnp.float32) * inv_l

        # GCN: h = relu(n_state @ (W1^T + I) + b1); then z = (wf @ W2) @ h @ proj
        h = jnp.maximum(
            jnp.dot(n_state, w1ti, preferred_element_type=jnp.float32) + b1, 0.0)
        g = jnp.dot(wfw2, h, preferred_element_type=jnp.float32)       # (C, Nn)
        zs.append(jnp.dot(g, proj_b, preferred_element_type=jnp.float32))  # (C, L)

    z = jnp.concatenate(zs, axis=1)                                     # (C, NL)

    # train-mode BatchNorm2d: per-channel stats over all N*H*W positions, single pass.
    # (E[z^2] - mean^2 is marginally less stable than the two-pass form; negligible
    #  at these magnitudes.)
    mean = jnp.sum(z, axis=1, keepdims=True) * inv_nl                   # (C, 1)
    var = jnp.sum(z * z, axis=1, keepdims=True) * inv_nl - mean * mean  # (C, 1)
    inv_std = jax.lax.rsqrt(var + EPS)

    o_ref[...] = x + (gamma_ref[...] * ((z - mean) * inv_std) + beta_ref[...])


# ---------------------- hoisted parameter preparation ----------------------

def prepare_glore_params(rgb_params, ir_params):
    """Run ONCE at init. Stacks the two streams and folds the static algebra so the
    jitted forward does zero parameter preprocessing per call."""
    f32 = jnp.float32

    def one(p):
        num_n = p['wp'].shape[0]
        w_sp = jnp.concatenate([p['ws'], p['wp']], axis=0)              # (S+Nn, C)
        b_sp = jnp.concatenate([p['bs'], p['bp']], axis=0)[:, None]     # (S+Nn, 1)
        w1ti = p['w1'].T + jnp.eye(num_n, dtype=p['w1'].dtype)          # (Nn, Nn)
        b1 = p['b1'][None, :]                                           # (1, Nn)
        wfw2 = jnp.dot(p['wf'], p['w2'])                                # (C, S)
        gamma = p['gamma'][:, None]                                     # (C, 1)
        beta = p['beta'][:, None]                                       # (C, 1)
        return (w_sp, b_sp, w1ti, b1, wfw2, gamma, beta)

    a, b = one(rgb_params), one(ir_params)
    return tuple(jnp.stack([x, y]).astype(f32) for x, y in zip(a, b))


# ------------------------------- forward --------------------------------

def glore_fusion_forward(rgb, ir, prepared):
    n, c, hh, ww = rgb.shape
    L = hh * ww
    NL = n * L
    f32 = jnp.float32

    w_sp, b_sp, w1ti, b1, wfw2, gamma, beta = prepared
    num_sn = w_sp.shape[1]
    num_n = w1ti.shape[1]
    num_s = num_sn - num_n

    # (2, N, C, L) -> (2, C, N*L): channels-first, batch folded into the lane dim.
    x_all = jnp.stack([rgb.reshape(n, c, L), ir.reshape(n, c, L)])
    x_all = x_all.transpose(0, 2, 1, 3).reshape(2, c, NL).astype(f32)

    kernel = functools.partial(glore_stream_kernel,
                               n_batch=n, num_s=num_s, seq_len=L)

    def spec2(d0, d1):
        return pl.BlockSpec((None, d0, d1), lambda s: (s, 0, 0))

    out = pl.pallas_call(
        kernel,
        out_shape=jax.ShapeDtypeStruct((2, c, NL), f32),
        grid=(2,),                                        # one grid step per stream
        in_specs=[
            spec2(c, NL),                                 # x (aliased with output)
            spec2(num_sn, c), spec2(num_sn, 1),           # stacked conv_state/conv_proj
            spec2(num_n, num_n), spec2(1, num_n),         # GCN conv1 (W^T + I), bias
            spec2(c, num_s),                              # wf @ w2
            spec2(c, 1), spec2(c, 1),                     # BN gamma, beta
        ],
        out_specs=spec2(c, NL),
        input_output_aliases={0: 0},                      # out = x + f(x): reuse x buffer
        compiler_params=pltpu.CompilerParams(
            dimension_semantics=("parallel",)),           # streams shard across TCs (v7x)
    )(x_all, w_sp, b_sp, w1ti, b1, wfw2, gamma, beta)

    out = out.reshape(2, c, n, L).transpose(0, 2, 1, 3)   # (2, N, C, L)
    return out[0].reshape(n, c, hh, ww), out[1].reshape(n, c, hh, ww)


# ------------------------------ reference --------------------------------

def _glore_stream_ref(x, p):
    """Pure-JAX reference for one stream (mirrors the PyTorch forward exactly)."""
    n, c, hh, ww = x.shape
    L = hh * ww
    hp = jax.lax.Precision.HIGHEST
    xr = x.reshape(n, c, L).astype(jnp.float32)
    state = jnp.einsum('sc,bcl->bsl', p['ws'], xr, precision=hp) + p['bs'][None, :, None]
    proj = jnp.einsum('mc,bcl->bml', p['wp'], xr, precision=hp) + p['bp'][None, :, None]
    n_state = jnp.einsum('bsl,bml->bsm', state, proj, precision=hp) * (1.0 / L)
    h = jnp.einsum('bsm,nm->bsn', n_state, p['w1'], precision=hp) + p['b1'][None, None, :]
    h = jnp.maximum(h + n_state, 0.0)
    n_rel = jnp.einsum('st,btn->bsn', p['w2'], h, precision=hp)
    y = jnp.einsum('bsn,bnl->bsl', n_rel, proj, precision=hp)
    z = jnp.einsum('cs,bsl->bcl', p['wf'], y, precision=hp)
    mean = jnp.mean(z, axis=(0, 2), keepdims=True)
    d = z - mean
    var = jnp.mean(d * d, axis=(0, 2), keepdims=True)
    bn = p['gamma'][None, :, None] * (d * jax.lax.rsqrt(var + EPS)) + p['beta'][None, :, None]
    return (xr + bn).reshape(n, c, hh, ww)


# -------------------------------- main -----------------------------------

if __name__ == "__main__":
    key = jax.random.PRNGKey(0)
    N, C, H, W = 2, 4, 16, 16              # batch=2, num_in=4, spatial=16
    NUM_MID = 16
    NUM_S, NUM_N = 2 * NUM_MID, NUM_MID    # num_s=32, num_n=16
    keys = jax.random.split(key, 22)
    rgb = jax.random.normal(keys[0], (N, C, H, W), jnp.float32)
    ir = jax.random.normal(keys[1], (N, C, H, W), jnp.float32)

    def make_stream_params(ks):
        return {
            'ws': 0.2 * jax.random.normal(ks[0], (NUM_S, C), jnp.float32),
            'bs': 0.1 * jax.random.normal(ks[1], (NUM_S,), jnp.float32),
            'wp': 0.2 * jax.random.normal(ks[2], (NUM_N, C), jnp.float32),
            'bp': 0.1 * jax.random.normal(ks[3], (NUM_N,), jnp.float32),
            'w1': 0.2 * jax.random.normal(ks[4], (NUM_N, NUM_N), jnp.float32),
            'b1': 0.1 * jax.random.normal(ks[5], (NUM_N,), jnp.float32),
            'w2': 0.2 * jax.random.normal(ks[6], (NUM_S, NUM_S), jnp.float32),
            'wf': 0.2 * jax.random.normal(ks[7], (C, NUM_S), jnp.float32),
            'gamma': 1.0 + 0.1 * jax.random.normal(ks[8], (C,), jnp.float32),
            'beta': 0.1 * jax.random.normal(ks[9], (C,), jnp.float32),
        }

    rgb_params = make_stream_params(keys[2:12])
    ir_params = make_stream_params(keys[12:22])

    # Hoisted once out of the hot path (perf feedback item).
    prepared = prepare_glore_params(rgb_params, ir_params)

    fwd = jax.jit(glore_fusion_forward)
    rgb_out, ir_out = fwd(rgb, ir, prepared)
    jax.block_until_ready((rgb_out, ir_out))
    assert rgb_out.shape == (N, C, H, W), rgb_out.shape
    assert ir_out.shape == (N, C, H, W), ir_out.shape

    rgb_ref = _glore_stream_ref(rgb, rgb_params)
    ir_ref = _glore_stream_ref(ir, ir_params)
    err = max(float(jnp.max(jnp.abs(rgb_out - rgb_ref))),
              float(jnp.max(jnp.abs(ir_out - ir_ref))))
    assert jnp.allclose(rgb_out, rgb_ref, atol=1e-2, rtol=1e-2), err
    assert jnp.allclose(ir_out, ir_ref, atol=1e-2, rtol=1e-2), err

    print("KERNEL_OK")
</pallas_src>

<mosaic_0001>
module attributes {stable_mosaic.version = 11 : i64} {
  func.func @glore_stream_kernel(%arg0: i32, %arg1: memref<1x4x512xf32, #tpu.memory_space<vmem>>, %arg2: memref<1x48x4xf32, #tpu.memory_space<vmem>>, %arg3: memref<1x48x1xf32, #tpu.memory_space<vmem>>, %arg4: memref<1x16x16xf32, #tpu.memory_space<vmem>>, %arg5: memref<1x1x16xf32, #tpu.memory_space<vmem>>, %arg6: memref<1x4x32xf32, #tpu.memory_space<vmem>>, %arg7: memref<1x4x1xf32, #tpu.memory_space<vmem>>, %arg8: memref<1x4x1xf32, #tpu.memory_space<vmem>>, %arg9: memref<1x4x512xf32, #tpu.memory_space<vmem>>) attributes {dimension_semantics = [#tpu.dimension_semantics<parallel>], iteration_bounds = array<i64: 2>, scalar_prefetch = 0 : i64, scratch_operands = 0 : i64, tpu.core_type = #tpu.core_type<tc>, window_params = [{transform_indices = @transform_0, window_bounds = array<i64: 1, 4, 512>}, {transform_indices = @transform_1, window_bounds = array<i64: 1, 48, 4>}, {transform_indices = @transform_2, window_bounds = array<i64: 1, 48, 1>}, {transform_indices = @transform_3, window_bounds = array<i64: 1, 16, 16>}, {transform_indices = @transform_4, window_bounds = array<i64: 1, 1, 16>}, {transform_indices = @transform_5, window_bounds = array<i64: 1, 4, 32>}, {transform_indices = @transform_6, window_bounds = array<i64: 1, 4, 1>}, {transform_indices = @transform_7, window_bounds = array<i64: 1, 4, 1>}, {transform_indices = @transform_8, window_bounds = array<i64: 1, 4, 512>}]} {
    %c0 = arith.constant 0 : index
    %c0_0 = arith.constant 0 : index
    %c0_1 = arith.constant 0 : index
    %0 = vector.load %arg1[%c0, %c0_0, %c0_1] : memref<1x4x512xf32, #tpu.memory_space<vmem>>, vector<1x4x512xf32>
    %1 = vector.shape_cast %0 : vector<1x4x512xf32> to vector<4x512xf32>
    %c0_2 = arith.constant 0 : index
    %c0_3 = arith.constant 0 : index
    %c0_4 = arith.constant 0 : index
    %2 = vector.load %arg2[%c0_2, %c0_3, %c0_4] : memref<1x48x4xf32, #tpu.memory_space<vmem>>, vector<1x48x4xf32>
    %3 = vector.shape_cast %2 : vector<1x48x4xf32> to vector<48x4xf32>
    %cst = arith.constant dense<0.000000e+00> : vector<48x512xf32>
    %4 = tpu.matmul %3, %1, %cst {dimension_numbers = #tpu.dot_dimension_numbers<[1], [0], [0], [1], [0, 0, 1, 1], [], []>} : vector<48x4xf32>, vector<4x512xf32>, vector<48x512xf32> -> vector<48x512xf32>
    %c0_5 = arith.constant 0 : index
    %c0_6 = arith.constant 0 : index
    %c0_7 = arith.constant 0 : index
    %5 = vector.load %arg3[%c0_5, %c0_6, %c0_7] : memref<1x48x1xf32, #tpu.memory_space<vmem>>, vector<1x48x1xf32>
    %6 = vector.shape_cast %5 : vector<1x48x1xf32> to vector<48x1xf32>
    %7 = vector.broadcast %6 : vector<48x1xf32> to vector<48x512xf32>
    %8 = arith.addf %4, %7 : vector<48x512xf32>
    %c0_8 = arith.constant 0 : index
    %c0_9 = arith.constant 0 : index
    %c0_10 = arith.constant 0 : index
    %9 = vector.load %arg4[%c0_8, %c0_9, %c0_10] : memref<1x16x16xf32, #tpu.memory_space<vmem>>, vector<1x16x16xf32>
    %10 = vector.shape_cast %9 : vector<1x16x16xf32> to vector<16x16xf32>
    %c0_11 = arith.constant 0 : index
    %c0_12 = arith.constant 0 : index
    %c0_13 = arith.constant 0 : index
    %11 = vector.load %arg5[%c0_11, %c0_12, %c0_13] : memref<1x1x16xf32, #tpu.memory_space<vmem>>, vector<1x1x16xf32>
    %12 = vector.shape_cast %11 : vector<1x1x16xf32> to vector<1x16xf32>
    %c0_14 = arith.constant 0 : index
    %c0_15 = arith.constant 0 : index
    %c0_16 = arith.constant 0 : index
    %13 = vector.load %arg6[%c0_14, %c0_15, %c0_16] : memref<1x4x32xf32, #tpu.memory_space<vmem>>, vector<1x4x32xf32>
    %14 = vector.shape_cast %13 : vector<1x4x32xf32> to vector<4x32xf32>
    %15 = vector.extract_strided_slice %8 {offsets = [0, 0], sizes = [32, 256], strides = [1, 1]} : vector<48x512xf32> to vector<32x256xf32>
    %16 = vector.extract_strided_slice %8 {offsets = [32, 0], sizes = [16, 256], strides = [1, 1]} : vector<48x512xf32> to vector<16x256xf32>
    %cst_17 = arith.constant dense<0.000000e+00> : vector<32x16xf32>
    %17 = tpu.matmul %15, %16, %cst_17 {dimension_numbers = #tpu.dot_dimension_numbers<[1], [1], [0], [0], [0, 0, 1, 0], [], []>} : vector<32x256xf32>, vector<16x256xf32>, vector<32x16xf32> -> vector<32x16xf32>
    %cst_18 = arith.constant 3.906250e-03 : f32
    %18 = vector.broadcast %cst_18 : f32 to vector<32x16xf32>
    %19 = arith.mulf %17, %18 : vector<32x16xf32>
    %cst_19 = arith.constant dense<0.000000e+00> : vector<32x16xf32>
    %20 = tpu.matmul %19, %10, %cst_19 {dimension_numbers = #tpu.dot_dimension_numbers<[1], [0], [0], [1], [0, 0, 1, 1], [], []>} : vector<32x16xf32>, vector<16x16xf32>, vector<32x16xf32> -> vector<32x16xf32>
    %21 = vector.broadcast %12 : vector<1x16xf32> to vector<32x16xf32>
    %22 = arith.addf %20, %21 : vector<32x16xf32>
    %cst_20 = arith.constant 0.000000e+00 : f32
    %23 = vector.broadcast %cst_20 : f32 to vector<32x16xf32>
    %24 = arith.maximumf %22, %23 : vector<32x16xf32>
    %cst_21 = arith.constant dense<0.000000e+00> : vector<4x16xf32>
    %25 = tpu.matmul %14, %24, %cst_21 {dimension_numbers = #tpu.dot_dimension_numbers<[1], [0], [0], [1], [0, 0, 1, 1], [], []>} : vector<4x32xf32>, vector<32x16xf32>, vector<4x16xf32> -> vector<4x16xf32>
    %cst_22 = arith.constant dense<0.000000e+00> : vector<4x256xf32>
    %26 = tpu.matmul %25, %16, %cst_22 {dimension_numbers = #tpu.dot_dimension_numbers<[1], [0], [0], [1], [0, 0, 1, 1], [], []>} : vector<4x16xf32>, vector<16x256xf32>, vector<4x256xf32> -> vector<4x256xf32>
    %27 = vector.extract_strided_slice %8 {offsets = [0, 256], sizes = [32, 256], strides = [1, 1]} : vector<48x512xf32> to vector<32x256xf32>
    %28 = vector.extract_strided_slice %8 {offsets = [32, 256], sizes = [16, 256], strides = [1, 1]} : vector<48x512xf32> to vector<16x256xf32>
    %cst_23 = arith.constant dense<0.000000e+00> : vector<32x16xf32>
    %29 = tpu.matmul %27, %28, %cst_23 {dimension_numbers = #tpu.dot_dimension_numbers<[1], [1], [0], [0], [0, 0, 1, 0], [], []>} : vector<32x256xf32>, vector<16x256xf32>, vector<32x16xf32> -> vector<32x16xf32>
    %cst_24 = arith.constant 3.906250e-03 : f32
    %30 = vector.broadcast %cst_24 : f32 to vector<32x16xf32>
    %31 = arith.mulf %29, %30 : vector<32x16xf32>
    %cst_25 = arith.constant dense<0.000000e+00> : vector<32x16xf32>
    %32 = tpu.matmul %31, %10, %cst_25 {dimension_numbers = #tpu.dot_dimension_numbers<[1], [0], [0], [1], [0, 0, 1, 1], [], []>} : vector<32x16xf32>, vector<16x16xf32>, vector<32x16xf32> -> vector<32x16xf32>
    %33 = vector.broadcast %12 : vector<1x16xf32> to vector<32x16xf32>
    %34 = arith.addf %32, %33 : vector<32x16xf32>
    %cst_26 = arith.constant 0.000000e+00 : f32
    %35 = vector.broadcast %cst_26 : f32 to vector<32x16xf32>
    %36 = arith.maximumf %34, %35 : vector<32x16xf32>
    %cst_27 = arith.constant dense<0.000000e+00> : vector<4x16xf32>
    %37 = tpu.matmul %14, %36, %cst_27 {dimension_numbers = #tpu.dot_dimension_numbers<[1], [0], [0], [1], [0, 0, 1, 1], [], []>} : vector<4x32xf32>, vector<32x16xf32>, vector<4x16xf32> -> vector<4x16xf32>
    %cst_28 = arith.constant dense<0.000000e+00> : vector<4x256xf32>
    %38 = tpu.matmul %37, %28, %cst_28 {dimension_numbers = #tpu.dot_dimension_numbers<[1], [0], [0], [1], [0, 0, 1, 1], [], []>} : vector<4x16xf32>, vector<16x256xf32>, vector<4x256xf32> -> vector<4x256xf32>
    %39 = tpu.concatenate %26, %38 in 1 : vector<4x256xf32>, vector<4x256xf32> -> vector<4x512xf32>
    %cst_29 = arith.constant dense<0.000000e+00> : vector<4xf32>
    %40 = vector.multi_reduction <add>, %39, %cst_29 [1] : vector<4x512xf32> to vector<4xf32>
    %41 = vector.shape_cast %40 : vector<4xf32> to vector<4x1xf32>
    %cst_30 = arith.constant 0.001953125 : f32
    %42 = vector.broadcast %cst_30 : f32 to vector<4x1xf32>
    %43 = arith.mulf %41, %42 : vector<4x1xf32>
    %44 = arith.mulf %39, %39 : vector<4x512xf32>
    %cst_31 = arith.constant dense<0.000000e+00> : vector<4xf32>
    %45 = vector.multi_reduction <add>, %44, %cst_31 [1] : vector<4x512xf32> to vector<4xf32>
    %46 = vector.shape_cast %45 : vector<4xf32> to vector<4x1xf32>
    %cst_32 = arith.constant 0.001953125 : f32
    %47 = vector.broadcast %cst_32 : f32 to vector<4x1xf32>
    %48 = arith.mulf %46, %47 : vector<4x1xf32>
    %49 = arith.mulf %43, %43 : vector<4x1xf32>
    %50 = arith.subf %48, %49 : vector<4x1xf32>
    %cst_33 = arith.constant 9.99999974E-6 : f32
    %51 = vector.broadcast %cst_33 : f32 to vector<4x1xf32>
    %52 = arith.addf %50, %51 : vector<4x1xf32>
    %53 = math.rsqrt %52 : vector<4x1xf32>
    %c0_34 = arith.constant 0 : index
    %c0_35 = arith.constant 0 : index
    %c0_36 = arith.constant 0 : index
    %54 = vector.load %arg7[%c0_34, %c0_35, %c0_36] : memref<1x4x1xf32, #tpu.memory_space<vmem>>, vector<1x4x1xf32>
    %55 = vector.shape_cast %54 : vector<1x4x1xf32> to vector<4x1xf32>
    %56 = vector.broadcast %43 : vector<4x1xf32> to vector<4x512xf32>
    %57 = arith.subf %39, %56 : vector<4x512xf32>
    %58 = vector.broadcast %53 : vector<4x1xf32> to vector<4x512xf32>
    %59 = arith.mulf %57, %58 : vector<4x512xf32>
    %60 = vector.broadcast %55 : vector<4x1xf32> to vector<4x512xf32>
    %61 = arith.mulf %60, %59 : vector<4x512xf32>
    %c0_37 = arith.constant 0 : index
    %c0_38 = arith.constant 0 : index
    %c0_39 = arith.constant 0 : index
    %62 = vector.load %arg8[%c0_37, %c0_38, %c0_39] : memref<1x4x1xf32, #tpu.memory_space<vmem>>, vector<1x4x1xf32>
    %63 = vector.shape_cast %62 : vector<1x4x1xf32> to vector<4x1xf32>
    %64 = vector.broadcast %63 : vector<4x1xf32> to vector<4x512xf32>
    %65 = arith.addf %61, %64 : vector<4x512xf32>
    %66 = arith.addf %1, %65 : vector<4x512xf32>
    %c0_40 = arith.constant 0 : index
    %c0_41 = arith.constant 0 : index
    %c0_42 = arith.constant 0 : index
    %67 = vector.load %arg9[%c0_40, %c0_41, %c0_42] : memref<1x4x512xf32, #tpu.memory_space<vmem>>, vector<1x4x512xf32>
    %68 = vector.shape_cast %67 : vector<1x4x512xf32> to vector<4x512xf32>
    %69 = vector.shape_cast %66 : vector<4x512xf32> to vector<1x4x512xf32>
    tpu.vector_store %arg9[%c0_40, %c0_41, %c0_42], %69 {strides = array<i32>} : memref<1x4x512xf32, #tpu.memory_space<vmem>>, vector<1x4x512xf32>,
    return
  }
  func.func @transform_0(%arg0: i32) -> (i32, i32, i32) {
    %c0_i32 = arith.constant 0 : i32
    %c0_i32_0 = arith.constant 0 : i32
    %c0_i32_1 = arith.constant 0 : i32
    return %arg0, %c0_i32, %c0_i32_0 : i32, i32, i32
  }
  func.func @transform_1(%arg0: i32) -> (i32, i32, i32) {
    %c0_i32 = arith.constant 0 : i32
    %c0_i32_0 = arith.constant 0 : i32
    %c0_i32_1 = arith.constant 0 : i32
    return %arg0, %c0_i32, %c0_i32_0 : i32, i32, i32
  }
  func.func @transform_2(%arg0: i32) -> (i32, i32, i32) {
    %c0_i32 = arith.constant 0 : i32
    %c0_i32_0 = arith.constant 0 : i32
    %c0_i32_1 = arith.constant 0 : i32
    return %arg0, %c0_i32, %c0_i32_0 : i32, i32, i32
  }
  func.func @transform_3(%arg0: i32) -> (i32, i32, i32) {
    %c0_i32 = arith.constant 0 : i32
    %c0_i32_0 = arith.constant 0 : i32
    %c0_i32_1 = arith.constant 0 : i32
    return %arg0, %c0_i32, %c0_i32_0 : i32, i32, i32
  }
  func.func @transform_4(%arg0: i32) -> (i32, i32, i32) {
    %c0_i32 = arith.constant 0 : i32
    %c0_i32_0 = arith.constant 0 : i32
    %c0_i32_1 = arith.constant 0 : i32
    return %arg0, %c0_i32, %c0_i32_0 : i32, i32, i32
  }
  func.func @transform_5(%arg0: i32) -> (i32, i32, i32) {
    %c0_i32 = arith.constant 0 : i32
    %c0_i32_0 = arith.constant 0 : i32
    %c0_i32_1 = arith.constant 0 : i32
    return %arg0, %c0_i32, %c0_i32_0 : i32, i32, i32
  }
  func.func @transform_6(%arg0: i32) -> (i32, i32, i32) {
    %c0_i32 = arith.constant 0 : i32
    %c0_i32_0 = arith.constant 0 : i32
    %c0_i32_1 = arith.constant 0 : i32
    return %arg0, %c0_i32, %c0_i32_0 : i32, i32, i32
  }
  func.func @transform_7(%arg0: i32) -> (i32, i32, i32) {
    %c0_i32 = arith.constant 0 : i32
    %c0_i32_0 = arith.constant 0 : i32
    %c0_i32_1 = arith.constant 0 : i32
    return %arg0, %c0_i32, %c0_i32_0 : i32, i32, i32
  }
  func.func @transform_8(%arg0: i32) -> (i32, i32, i32) {
    %c0_i32 = arith.constant 0 : i32
    %c0_i32_0 = arith.constant 0 : i32
    %c0_i32_1 = arith.constant 0 : i32
    return %arg0, %c0_i32, %c0_i32_0 : i32, i32, i32
  }
}

</mosaic_0001>

<llo_original>
// kernel: squeeze.2
$region0: #{squeeze.2}
  %s0 = inlined_call_operand.vmem [shape: f32[1,2,4,256], index: 0, kind: input, shape index: {}]
  %s1 = inlined_call_operand.hbm [shape: f32[2,4,16,16], index: 1, kind: output, shape index: {}]
  $region1: #{squeeze.2} parent=0
    #allocation0 [shape = 'u8[65536]{0}', space=vmem, size = 0x10000, scoped, tag = 'operand span for operand 1']
    #allocation1 [shape = 's32[1]{0}', space=sflag, size = 0x4, scoped, tag = 'scoped memory for squeeze.2']
    #allocation2 [shape = 'u8[16384]{0}', space=vmem, size = 0x4000, scoped, tag = 'scoped mem for input reshape']
    %2 = vsyncpa [#allocation1], 0
    %s4 = ssub.s32 16, 1
    %s5 = scalar_lea.vmem %s0, 12
    %v6 = vld [vmem:[%s5] sm:%s4]
    %s7 = scalar_lea.vmem [#allocation2], 24
    %8 = vst [vmem:[%s7] sm:%s4] %v6
    %s9 = scalar_lea.vmem %s0, 8
    %v10 = vld [vmem:[%s9] sm:%s4]
    %s11 = scalar_lea.vmem [#allocation2], 16
    %12 = vst [vmem:[%s11] sm:%s4] %v10
    %s13 = scalar_lea.vmem %s0, 4
    %v14 = vld [vmem:[%s13] sm:%s4]
    %s15 = scalar_lea.vmem [#allocation2], 8
    %16 = vst [vmem:[%s15] sm:%s4] %v14
    %v17 = vld [vmem:[%s0] sm:%s4]
    %18 = vst [vmem:[#allocation2] sm:%s4] %v17
    %v19 = vld [vmem:[#allocation2] sm:$0xf]
    %vm20 = vcmask 130048
    %21 = vst.msk [vmem:[#allocation0] ss:$16 sm:$0x3] %vm20, %v19
    %22 = vst.msk [vmem:[#allocation0] ss:$16 sm:$0xc] %vm20, %v19
    %s23 = scalar_lea.vmem [#allocation2], 8
    %v24 = vld [vmem:[%s23] sm:$0xf]
    %vm25 = vcmask 130048
    %s26 = scalar_lea.vmem [#allocation0], 8
    %27 = vst.msk [vmem:[%s26] ss:$16 sm:$0x3] %vm25, %v24
    %s28 = scalar_lea.vmem [#allocation0], 8
    %29 = vst.msk [vmem:[%s28] ss:$16 sm:$0xc] %vm25, %v24
    %s30 = scalar_lea.vmem [#allocation2], 16
    %v31 = vld [vmem:[%s30] sm:$0xf]
    %vm32 = vcmask 130048
    %s33 = scalar_lea.vmem [#allocation0], 64
    %34 = vst.msk [vmem:[%s33] ss:$16 sm:$0x3] %vm32, %v31
    %s35 = scalar_lea.vmem [#allocation0], 64
    %36 = vst.msk [vmem:[%s35] ss:$16 sm:$0xc] %vm32, %v31
    %s37 = scalar_lea.vmem [#allocation2], 24
    %v38 = vld [vmem:[%s37] sm:$0xf]
    %vm39 = vcmask 130048
    %s40 = scalar_lea.vmem [#allocation0], 72
    %41 = vst.msk [vmem:[%s40] ss:$16 sm:$0x3] %vm39, %v38
    %s42 = scalar_lea.vmem [#allocation0], 72
    %43 = vst.msk [vmem:[%s42] ss:$16 sm:$0xc] %vm39, %v38
    %v44 = vld.sshfl [vmem:[#allocation2] sm:$0xff pattern:$0xb3a29180]
    %45 = vrot.lane.b32.xlu0 %v44, 112
    %v46 = vpop.permute.xlu0 %45
    %vm47 = vcmask 130048
    %s48 = scalar_lea.vmem [#allocation0], 1
    %49 = vst.msk [vmem:[%s48] ss:$8 sm:$0xf] %vm47, %v46
    %s50 = scalar_lea.vmem [#allocation0], 1
    %51 = vst.msk [vmem:[%s50] ss:$8 sm:$0xf0] %vm47, %v46
    %s52 = scalar_lea.vmem [#allocation2], 16
    %v53 = vld.sshfl [vmem:[%s52] sm:$0xff pattern:$0xb3a29180]
    %54 = vrot.lane.b32.xlu0 %v53, 112
    %v55 = vpop.permute.xlu0 %54
    %vm56 = vcmask 130048
    %s57 = scalar_lea.vmem [#allocation0], 65
    %58 = vst.msk [vmem:[%s57] ss:$8 sm:$0xf] %vm56, %v55
    %s59 = scalar_lea.vmem [#allocation0], 65
    %60 = vst.msk [vmem:[%s59] ss:$8 sm:$0xf0] %vm56, %v55
    %v61 = vld.sshfl [vmem:[#allocation2] sm:$0xff pattern:$0xb3a29180]
    %62 = vrot.lane.b32.xlu0 %v61, 96
    %v63 = vpop.permute.xlu0 %62
    %vm64 = vcmask 130048
    %s65 = scalar_lea.vmem [#allocation0], 2
    %66 = vst.msk [vmem:[%s65] ss:$8 sm:$0xf] %vm64, %v63
    %s67 = scalar_lea.vmem [#allocation0], 2
    %68 = vst.msk [vmem:[%s67] ss:$8 sm:$0xf0] %vm64, %v63
    %s69 = scalar_lea.vmem [#allocation2], 16
    %v70 = vld.sshfl [vmem:[%s69] sm:$0xff pattern:$0xb3a29180]
    %71 = vrot.lane.b32.xlu0 %v70, 96
    %v72 = vpop.permute.xlu0 %71
    %vm73 = vcmask 130048
    %s74 = scalar_lea.vmem [#allocation0], 66
    %75 = vst.msk [vmem:[%s74] ss:$8 sm:$0xf] %vm73, %v72
    %s76 = scalar_lea.vmem [#allocation0], 66
    %77 = vst.msk [vmem:[%s76] ss:$8 sm:$0xf0] %vm73, %v72
    %v78 = vld.sshfl [vmem:[#allocation2] sm:$0xff pattern:$0xb3a29180]
    %79 = vrot.lane.b32.xlu0 %v78, 80
    %v80 = vpop.permute.xlu0 %79
    %vm81 = vcmask 130048
    %s82 = scalar_lea.vmem [#allocation0], 3
    %83 = vst.msk [vmem:[%s82] ss:$8 sm:$0xf] %vm81, %v80
    %s84 = scalar_lea.vmem [#allocation0], 3
    %85 = vst.msk [vmem:[%s84] ss:$8 sm:$0xf0] %vm81, %v80
    %s86 = scalar_lea.vmem [#allocation2], 16
    %v87 = vld.sshfl [vmem:[%s86] sm:$0xff pattern:$0xb3a29180]
    %88 = vrot.lane.b32.xlu0 %v87, 80
    %v89 = vpop.permute.xlu0 %88
    %vm90 = vcmask 130048
    %s91 = scalar_lea.vmem [#allocation0], 67
    %92 = vst.msk [vmem:[%s91] ss:$8 sm:$0xf] %vm90, %v89
    %s93 = scalar_lea.vmem [#allocation0], 67
    %94 = vst.msk [vmem:[%s93] ss:$8 sm:$0xf0] %vm90, %v89
    %v95 = vld.sshfl [vmem:[#allocation2] sm:$0xff pattern:$0xb3a29180]
    %96 = vrot.lane.b32.xlu0 %v95, 64
    %v97 = vpop.permute.xlu0 %96
    %vm98 = vcmask 130048
    %s99 = scalar_lea.vmem [#allocation0], 4
    %100 = vst.msk [vmem:[%s99] ss:$8 sm:$0xf] %vm98, %v97
    %s101 = scalar_lea.vmem [#allocation0], 4
    %102 = vst.msk [vmem:[%s101] ss:$8 sm:$0xf0] %vm98, %v97
    %s103 = scalar_lea.vmem [#allocation2], 16
    %v104 = vld.sshfl [vmem:[%s103] sm:$0xff pattern:$0xb3a29180]
    %105 = vrot.lane.b32.xlu0 %v104, 64
    %v106 = vpop.permute.xlu0 %105
    %vm107 = vcmask 130048
    %s108 = scalar_lea.vmem [#allocation0], 68
    %109 = vst.msk [vmem:[%s108] ss:$8 sm:$0xf] %vm107, %v106
    %s110 = scalar_lea.vmem [#allocation0], 68
    %111 = vst.msk [vmem:[%s110] ss:$8 sm:$0xf0] %vm107, %v106
    %v112 = vld.sshfl [vmem:[#allocation2] sm:$0xff pattern:$0xb3a29180]
    %113 = vrot.lane.b32.xlu0 %v112, 48
    %v114 = vpop.permute.xlu0 %113
    %vm115 = vcmask 130048
    %s116 = scalar_lea.vmem [#allocation0], 5
    %117 = vst.msk [vmem:[%s116] ss:$8 sm:$0xf] %vm115, %v114
    %s118 = scalar_lea.vmem [#allocation0], 5
    %119 = vst.msk [vmem:[%s118] ss:$8 sm:$0xf0] %vm115, %v114
    %s120 = scalar_lea.vmem [#allocation2], 16
    %v121 = vld.sshfl [vmem:[%s120] sm:$0xff pattern:$0xb3a29180]
    %122 = vrot.lane.b32.xlu0 %v121, 48
    %v123 = vpop.permute.xlu0 %122
    %vm124 = vcmask 130048
    %s125 = scalar_lea.vmem [#allocation0], 69
    %126 = vst.msk [vmem:[%s125] ss:$8 sm:$0xf] %vm124, %v123
    %s127 = scalar_lea.vmem [#allocation0], 69
    %128 = vst.msk [vmem:[%s127] ss:$8 sm:$0xf0] %vm124, %v123
    %v129 = vld.sshfl [vmem:[#allocation2] sm:$0xff pattern:$0xb3a29180]
    %130 = vrot.lane.b32.xlu0 %v129, 32
    %v131 = vpop.permute.xlu0 %130
    %vm132 = vcmask 130048
    %s133 = scalar_lea.vmem [#allocation0], 6
    %134 = vst.msk [vmem:[%s133] ss:$8 sm:$0xf] %vm132, %v131
    %s135 = scalar_lea.vmem [#allocation0], 6
    %136 = vst.msk [vmem:[%s135] ss:$8 sm:$0xf0] %vm132, %v131
    %s137 = scalar_lea.vmem [#allocation2], 16
    %v138 = vld.sshfl [vmem:[%s137] sm:$0xff pattern:$0xb3a29180]
    %139 = vrot.lane.b32.xlu0 %v138, 32
    %v140 = vpop.permute.xlu0 %139
    %vm141 = vcmask 130048
    %s142 = scalar_lea.vmem [#allocation0], 70
    %143 = vst.msk [vmem:[%s142] ss:$8 sm:$0xf] %vm141, %v140
    %s144 = scalar_lea.vmem [#allocation0], 70
    %145 = vst.msk [vmem:[%s144] ss:$8 sm:$0xf0] %vm141, %v140
    %v146 = vld.sshfl [vmem:[#allocation2] sm:$0xff pattern:$0xb3a29180]
    %147 = vrot.lane.b32.xlu0 %v146, 16
    %v148 = vpop.permute.xlu0 %147
    %vm149 = vcmask 130048
    %s150 = scalar_lea.vmem [#allocation0], 7
    %151 = vst.msk [vmem:[%s150] ss:$8 sm:$0xf] %vm149, %v148
    %s152 = scalar_lea.vmem [#allocation0], 7
    %153 = vst.msk [vmem:[%s152] ss:$8 sm:$0xf0] %vm149, %v148
    %s154 = scalar_lea.vmem [#allocation2], 16
    %v155 = vld.sshfl [vmem:[%s154] sm:$0xff pattern:$0xb3a29180]
    %156 = vrot.lane.b32.xlu0 %v155, 16
    %v157 = vpop.permute.xlu0 %156
    %vm158 = vcmask 130048
    %s159 = scalar_lea.vmem [#allocation0], 71
    %160 = vst.msk [vmem:[%s159] ss:$8 sm:$0xf] %vm158, %v157
    %s161 = scalar_lea.vmem [#allocation0], 71
    %162 = vst.msk [vmem:[%s161] ss:$8 sm:$0xf0] %vm158, %v157
    %164 = vsyncadd [#allocation1], 0
    %s166 = sshll.u32 [#allocation0], 4
    %s167 = int_to_ptr.vmem [resolvable:$true] %s166
    %s168 = sshll.u32 %s1, 4
    %s169 = int_to_ptr.hbm [resolvable:$true] %s168
    %171 = dma.vmem_to_hbm [thread:$0]  %s167, 2048, %s169, [#allocation1]
    %173 = dma.done [#allocation1], 2048
    %174 = vsyncpa [#allocation1], 1

</llo_original>
